<compile_context>
chip_gen: v7x
topology: tpu7x:2x2x1
jax: 0.10.0
libtpu: 0.0.40
codegen_flags: <defaults>
</compile_context>

<pallas_src>
import functools

import jax
import jax.numpy as jnp
from jax import lax
from jax.experimental import pallas as pl
from jax.experimental.pallas import tpu as pltpu


def _round_up(x, m):
    return -(-x // m) * m


def _vmem_capacity_bytes():
    # Generation-aware VMEM capacity (v5e/v6e: 128 MiB; v7x: 64 MiB per TC).
    try:
        return int(pltpu.get_tpu_info().vmem_capacity_bytes)
    except Exception:  # conservative fallback = smallest (v7x per-TC) VMEM
        return 64 * 1024 * 1024


def _block_plan(n, c, hw, itemsize, max_block_bytes=None):
    """Pick (c_block, tile, groups, s_per_group, ...) for the streaming reduction.

    Rules (per perf review):
      * keep the contiguous HBM segment (tile * itemsize) >= ~8 KiB; tile the
        channel dim (multiples of 8 dividing C) instead of shrinking the tile.
      * per-block budget is generation aware: ~8 MiB on 64 MiB-VMEM parts (v7x),
        ~12 MiB on 128 MiB-VMEM parts (v5e/v6e); Pallas double-buffers it.
      * spatial remainders are handled with masked partial tiles, never a
        full-(N, C, HW) fallback block.
    """
    vmem_bytes = _vmem_capacity_bytes()
    if max_block_bytes is None:
        block_budget = (12 * 1024 * 1024 if vmem_bytes >= 96 * 1024 * 1024
                        else 8 * 1024 * 1024)
    else:
        block_budget = int(max_block_bytes)

    hw_pad = _round_up(hw, 128) if hw >= 128 else hw
    # >= 8 KiB contiguous per (n, c) row (2048 f32 / 4096 bf16 elements).
    tile_min = min(hw_pad, max(128, _round_up(8192 // itemsize, 128)))

    # Channel block: largest multiple-of-8 divisor of C that fits the budget at
    # tile_min; full C is always legal (block dim == array dim).
    cands = sorted({d for d in range(8, c + 1, 8) if c % d == 0} | {c}, reverse=True)
    fitting = [cb for cb in cands if n * cb * tile_min * itemsize <= block_budget]
    c_block = fitting[0] if fitting else cands[-1]

    if hw < 128:
        tile = hw
    else:
        tile_cap = max(128, (block_budget // max(1, n * c_block * itemsize)) // 128 * 128)
        tile = min(hw_pad, tile_cap)

    n_s_blocks = -(-hw // tile)
    # Split the spatial reduction across 2 groups whenever possible so both v7x
    # TensorCores get work (uneven splits are covered by masked empty tiles).
    # On single-TC chips (v5e/v6e) the extra group only costs one tiny writeback.
    groups = 2 if n_s_blocks >= 2 else 1
    s_per_group = -(-n_s_blocks // groups)
    needs_mask = (groups * s_per_group * tile) != hw

    block_bytes = n * c_block * tile * itemsize
    vmem_limit = int(min(max(2 * block_bytes + (4 << 20), 16 << 20),
                         (vmem_bytes * 3) // 4))
    return (c_block, tile, groups, s_per_group, n_s_blocks, needs_mask,
            block_bytes, vmem_limit)


def _spatial_sum_kernel(x_ref, sum_ref, *, tile, hw, s_per_group, needs_mask):
    # x_ref:   (N, c_block, tile)  one spatial tile of the (N, C, H*W) input
    # sum_ref: (1, N, c_block)     f32 partial sum, revisited across the spatial axis
    si = pl.program_id(2)

    @pl.when(si == 0)
    def _():
        sum_ref[...] = jnp.zeros_like(sum_ref)

    x = x_ref[...]
    if needs_mask:
        # Mask the partial last tile and the fully-empty tiles produced by the
        # uneven 2-group split (their DMA just re-reads the clamped last block).
        start = (pl.program_id(0) * s_per_group + si) * tile
        offs = start + lax.broadcasted_iota(jnp.int32, x.shape, dimension=2)
        x = jnp.where(offs < hw, x, jnp.zeros_like(x))
    # widen-on-accumulate: f32 accumulation regardless of input dtype (bf16 ok)
    sum_ref[...] += jnp.sum(x, axis=-1, dtype=jnp.float32)[None, :, :]


def pose_dof(x_nchw, weight, bias, *, max_block_bytes=None):
    """dof = 0.01 * mean_{H,W}(conv1x1(x)), computed mean-first.

    x_nchw: (N, C, H, W) float (pass bf16 to halve HBM traffic; accumulation is f32)
    weight: (6, C, 1, 1) PyTorch conv1x1 weight layout
    bias:   (6,)
    returns (N, 6) float32
    """
    n, c, h, w = x_nchw.shape
    hw = h * w
    x3 = x_nchw.reshape(n, c, hw)  # free reshape, stays in NCHW element order
    itemsize = jnp.dtype(x_nchw.dtype).itemsize

    (c_block, tile, groups, s_per_group, n_s_blocks,
     needs_mask, _block_bytes, vmem_limit) = _block_plan(
        n, c, hw, itemsize, max_block_bytes)
    n_c_blocks = c // c_block
    s_last = n_s_blocks - 1

    def x_index_map(g, ci, si):
        # Clamp so fully-empty tiles (uneven group split) stay in bounds; their
        # contribution is masked to zero inside the kernel.
        return 0, ci, jnp.minimum(g * s_per_group + si, s_last)

    def out_index_map(g, ci, si):
        return g, 0, ci

    kernel = functools.partial(_spatial_sum_kernel, tile=tile, hw=hw,
                               s_per_group=s_per_group, needs_mask=needs_mask)

    partial_sums = pl.pallas_call(
        kernel,
        out_shape=jax.ShapeDtypeStruct((groups, n, c), jnp.float32),
        grid_spec=pltpu.PrefetchScalarGridSpec(
            num_scalar_prefetch=0,
            grid=(groups, n_c_blocks, s_per_group),
            in_specs=[pl.BlockSpec((n, c_block, tile), x_index_map)],
            out_specs=pl.BlockSpec((1, n, c_block), out_index_map),
        ),
        compiler_params=pltpu.CompilerParams(
            dimension_semantics=("parallel", "parallel", "arbitrary"),
            vmem_limit_bytes=vmem_limit),
        cost_estimate=pl.CostEstimate(
            flops=int(n * c * hw),                       # one add per element
            transcendentals=0,
            bytes_accessed=int(n * c * hw * itemsize + groups * n * c * 4)),
    )(x3)

    # Tiny epilogue in plain JAX: combine group partials, mean, project to 6-DoF.
    sums = jnp.sum(partial_sums, axis=0)                 # (N, C) f32
    mean_x = sums / jnp.float32(hw)
    w2 = weight.reshape(6, c).T.astype(jnp.float32)      # (C, 6)
    b2 = bias.astype(jnp.float32).reshape(1, 6)
    return 0.01 * (mean_x @ w2 + b2)                     # (N, 6)


def pose_matrix_from_dof(dof):
    # dof: (N, 6) = [rx, ry, rz, tx, ty, tz]
    # Matches net_utils.pose_matrix(..., rotation_parameterization='axis'):
    #   M = [[R(axis_angle), t], [0, 1]]
    # Tiny per-sample scalar math; plain JAX glue (with a safe small-angle branch).
    dof = dof.astype(jnp.float32)
    r = dof[:, :3]
    t = dof[:, 3:]
    n = dof.shape[0]

    theta2 = jnp.sum(r * r, axis=1, keepdims=True)              # (N, 1)
    small = theta2 < 1e-12
    theta = jnp.sqrt(jnp.where(small, 1.0, theta2))             # safe: no NaN at 0
    axis = r / theta                                            # unit when not small
    ca = jnp.cos(theta)[:, 0]
    sa = jnp.sin(theta)[:, 0]
    cc = 1.0 - ca
    ax, ay, az = axis[:, 0], axis[:, 1], axis[:, 2]
    xs, ys, zs = ax * sa, ay * sa, az * sa
    xc, yc, zc = ax * cc, ay * cc, az * cc
    xyc, yzc, zxc = ax * yc, ay * zc, az * xc
    r0 = jnp.stack([ax * xc + ca, xyc - zs, zxc + ys], axis=1)
    r1 = jnp.stack([xyc + zs, ay * yc + ca, yzc - xs], axis=1)
    r2 = jnp.stack([zxc - ys, yzc + xs, az * zc + ca], axis=1)
    rot = jnp.stack([r0, r1, r2], axis=1)                       # (N, 3, 3)

    # small-angle branch: R ~= I + skew(r)
    rx, ry, rz = r[:, 0], r[:, 1], r[:, 2]
    one = jnp.ones_like(rx)
    rot_small = jnp.stack([
        jnp.stack([one, -rz, ry], axis=1),
        jnp.stack([rz, one, -rx], axis=1),
        jnp.stack([-ry, rx, one], axis=1)], axis=1)             # (N, 3, 3)
    rot = jnp.where(small[:, :, None], rot_small, rot)

    top = jnp.concatenate([rot, t[:, :, None]], axis=2)         # (N, 3, 4)
    bottom = jnp.broadcast_to(jnp.array([0.0, 0.0, 0.0, 1.0], jnp.float32),
                              (n, 1, 4))
    return jnp.concatenate([top, bottom], axis=1)               # (N, 4, 4)


def pose_decoder_forward(x_nchw, weight, bias,
                         rotation_parameterization="axis", *, max_block_bytes=None):
    # TODO(synk): the n_filters > 0 branch (3x3 stride-2 convs + leaky_relu/BN) is
    # not implemented; the default constructor (n_filters=[]) only uses the 1x1
    # conv, which the mean-first identity above relies on (no activation / BN).
    assert rotation_parameterization == "axis"
    dof = pose_dof(x_nchw, weight, bias, max_block_bytes=max_block_bytes)
    return pose_matrix_from_dof(dof)


if __name__ == "__main__":
    key = jax.random.PRNGKey(0)
    kx, kw, kb = jax.random.split(key, 3)

    # small shapes consistent with the forward: N x C x H x W latent
    N, C, H, W = 2, 16, 40, 40
    x = jax.random.normal(kx, (N, C, H, W), dtype=jnp.float32)

    # deterministic kaiming_uniform-style init for the 1x1 conv (fan_in = C * 1 * 1)
    fan_in = float(C)
    w_bound = (6.0 / fan_in) ** 0.5
    b_bound = 1.0 / fan_in ** 0.5
    weight = jax.random.uniform(kw, (6, C, 1, 1), jnp.float32, -w_bound, w_bound)
    bias = jax.random.uniform(kb, (6,), jnp.float32, -b_bound, b_bound)

    # pure-JAX reference of the same forward semantics
    mean_x = x.reshape(N, C, H * W).mean(axis=-1)
    dof_ref = 0.01 * (mean_x @ weight.reshape(6, C).T + bias[None, :])
    ref = pose_matrix_from_dof(dof_ref)

    # (1) default plan: single large block, masked spatial remainder (HW=1600)
    out_default = jax.block_until_ready(pose_decoder_forward(x, weight, bias))
    # (2) tiny forced block budget (test-only): exercises channel tiling
    #     (2 C-blocks), the 2-group split of the spatial reduction, multi-step
    #     f32 accumulation, and masked partial / empty tiles
    out_tiled = jax.block_until_ready(
        pose_decoder_forward(x, weight, bias, max_block_bytes=48 * 1024))

    for out in (out_default, out_tiled):
        assert out.shape == (N, 4, 4) and out.dtype == jnp.float32
        assert jnp.allclose(out, ref, atol=1e-5, rtol=1e-5)
    print("KERNEL_OK")
</pallas_src>

<mosaic_0001>
module attributes {stable_mosaic.version = 11 : i64} {
  func.func @_spatial_sum_kernel(%arg0: i32, %arg1: i32, %arg2: i32, %arg3: memref<2x16x1664xf32, #tpu.memory_space<vmem>>, %arg4: memref<1x2x16xf32, #tpu.memory_space<vmem>>) attributes {dimension_semantics = [#tpu.dimension_semantics<parallel>, #tpu.dimension_semantics<parallel>, #tpu.dimension_semantics<arbitrary>], iteration_bounds = array<i64: 1, 1, 1>, scalar_prefetch = 0 : i64, scratch_operands = 0 : i64, tpu.core_type = #tpu.core_type<tc>, window_params = [{transform_indices = @transform_0, window_bounds = array<i64: 2, 16, 1664>}, {transform_indices = @transform_1, window_bounds = array<i64: 1, 2, 16>}]} {
    %c0_i32 = arith.constant 0 : i32
    %0 = arith.cmpi eq, %arg2, %c0_i32 : i32
    %1 = arith.extui %0 : i1 to i32
    %c0_i32_0 = arith.constant 0 : i32
    %2 = arith.cmpi ne, %1, %c0_i32_0 : i32
    scf.if %2 {
      %cst_10 = arith.constant 0.000000e+00 : f32
      %19 = vector.broadcast %cst_10 : f32 to vector<1x2x16xf32>
      %c0_11 = arith.constant 0 : index
      %c0_12 = arith.constant 0 : index
      %c0_13 = arith.constant 0 : index
      %20 = vector.load %arg4[%c0_11, %c0_12, %c0_13] : memref<1x2x16xf32, #tpu.memory_space<vmem>>, vector<1x2x16xf32>
      tpu.vector_store %arg4[%c0_11, %c0_12, %c0_13], %19 {strides = array<i32>} : memref<1x2x16xf32, #tpu.memory_space<vmem>>, vector<1x2x16xf32>,
    } else {
    }
    %c0 = arith.constant 0 : index
    %c0_1 = arith.constant 0 : index
    %c0_2 = arith.constant 0 : index
    %3 = vector.load %arg3[%c0, %c0_1, %c0_2] : memref<2x16x1664xf32, #tpu.memory_space<vmem>>, vector<2x16x1664xf32>
    %c1_i32 = arith.constant 1 : i32
    %4 = arith.muli %arg0, %c1_i32 : i32
    %5 = arith.addi %4, %arg2 : i32
    %c1664_i32 = arith.constant 1664 : i32
    %6 = arith.muli %5, %c1664_i32 : i32
    %7 = tpu.iota {dimensions = array<i32: 2>} : vector<2x16x1664xi32>
    %8 = vector.broadcast %6 : i32 to vector<2x16x1664xi32>
    %9 = arith.addi %8, %7 : vector<2x16x1664xi32>
    %c1600_i32 = arith.constant 1600 : i32
    %10 = vector.broadcast %c1600_i32 : i32 to vector<2x16x1664xi32>
    %11 = arith.cmpi slt, %9, %10 : vector<2x16x1664xi32>
    %cst = arith.constant 0.000000e+00 : f32
    %12 = vector.broadcast %cst : f32 to vector<2x16x1664xf32>
    %13 = arith.select %11, %3, %12 : vector<2x16x1664xi1>, vector<2x16x1664xf32>
    %c0_3 = arith.constant 0 : index
    %c0_4 = arith.constant 0 : index
    %c0_5 = arith.constant 0 : index
    %14 = vector.load %arg4[%c0_3, %c0_4, %c0_5] : memref<1x2x16xf32, #tpu.memory_space<vmem>>, vector<1x2x16xf32>
    %cst_6 = arith.constant dense<0.000000e+00> : vector<2x16xf32>
    %15 = vector.multi_reduction <add>, %13, %cst_6 [2] : vector<2x16x1664xf32> to vector<2x16xf32>
    %16 = vector.shape_cast %15 : vector<2x16xf32> to vector<1x2x16xf32>
    %17 = arith.addf %14, %16 : vector<1x2x16xf32>
    %c0_7 = arith.constant 0 : index
    %c0_8 = arith.constant 0 : index
    %c0_9 = arith.constant 0 : index
    %18 = vector.load %arg4[%c0_7, %c0_8, %c0_9] : memref<1x2x16xf32, #tpu.memory_space<vmem>>, vector<1x2x16xf32>
    tpu.vector_store %arg4[%c0_7, %c0_8, %c0_9], %17 {strides = array<i32>} : memref<1x2x16xf32, #tpu.memory_space<vmem>>, vector<1x2x16xf32>,
    return
  }
  func.func @transform_0(%arg0: i32, %arg1: i32, %arg2: i32) -> (i32, i32, i32) {
    %c1_i32 = arith.constant 1 : i32
    %0 = arith.muli %arg0, %c1_i32 : i32
    %1 = arith.addi %0, %arg2 : i32
    %c0_i32 = arith.constant 0 : i32
    %2 = arith.minsi %1, %c0_i32 : i32
    %c0_i32_0 = arith.constant 0 : i32
    %c0_i32_1 = arith.constant 0 : i32
    return %c0_i32_0, %arg1, %2 : i32, i32, i32
  }
  func.func @transform_1(%arg0: i32, %arg1: i32, %arg2: i32) -> (i32, i32, i32) {
    %c0_i32 = arith.constant 0 : i32
    %c0_i32_0 = arith.constant 0 : i32
    return %arg0, %c0_i32, %arg1 : i32, i32, i32
  }
}

</mosaic_0001>

<llo_original>
// kernel: tpu_custom_call.1
$region0: #{tpu_custom_call.1}
  #allocation0 [shape = 'u32[]', space=smem, size = 0x4, offset = 0x4, fixed_abs, tag = 'smem constant byte address 0x4 - core index']
  #allocation1 [shape = 'u32[144,128]{1,0:T(1,128)}', space=vmem, size = 0x12000, scoped, tag = 'internal scratch']
  %s0 = inlined_call_operand.hbm [shape: f32[2,16,1600], index: 0, kind: input, shape index: {}]
  %s1 = inlined_call_operand.hbm [shape: f32[1,2,16], index: 1, kind: output, shape index: {}]
  %s2 = sld [smem:[#allocation0]]
  $region22: #{tpu_custom_call.1} parent=0
    _
  %s4 = ssub.s32 1, %s2
  %s5 = scalar_select 0, %s4, %s2
  $region1: #{tpu_custom_call.1} parent=0
    #allocation2 [shape = 'u8[212992]{0}', space=vmem, size = 0x34000, scoped, tag = 'input window, operand 0, single buffered']
    #allocation3 [shape = 's32[1]{0}', space=sflag, size = 0x4, scoped, tag = 'scoped memory for tpu_custom_call.1']
    #allocation4 [shape = 's32[1]{0}', space=sflag, size = 0x4, scoped, tag = 'scoped memory for tpu_custom_call.1']
    #allocation5 [shape = 'u8[1024]{0}', space=vmem, size = 0x400, scoped, tag = 'output window, operand 0, single buffered']
    %6 = vsyncpa [#allocation3], 0
    %7 = vsyncpa [#allocation4], 0
    // Predicated region
    $region2: #{tpu_custom_call.1} parent=1 // pred_check
      _
    $region3: #{tpu_custom_call.1} parent=1 // pred_check_branch
      %9 = sbr.rel (0) target = $region5
    $region4: #{tpu_custom_call.1} parent=1 // pred_region
      %s10 = sadd.s32 0, 0
      %p11 = scmp.lt.s32.totalorder %s10, 0
      %s12 = scalar_select %p11, %s10, 0
      %s13 = smul.u32 13, %s12
      %s15 = ssub.s32 6656, 6656
      %16 = vsyncadd [#allocation3], %s15
      %s17 = smul.addr %s13, 128
      %s18 = scalar_lea.hbm %s0, %s17
      %s19 = sshll.u32 [#allocation2], 4
      %s20 = int_to_ptr.vmem [resolvable:$true] %s19
      %25 = dma.hbm_to_vmem [thread:$0]  %s18, 6656, %s20, [#allocation3], 1664, 1664, 104
    $region5: #{tpu_custom_call.1} parent=1 // pred_fallthru
      _
    // Predicated region
    $region6: #{tpu_custom_call.1} parent=1 // pred_check
      _
    $region7: #{tpu_custom_call.1} parent=1 // pred_check_branch
      %27 = sbr.rel (0) target = $region9
    $region8: #{tpu_custom_call.1} parent=1 // pred_region
      %28 = dma.done [#allocation3], 6656
    $region9: #{tpu_custom_call.1} parent=1 // pred_fallthru
      _
    %s29 = sadd.s32 0, 0
    %p30 = scmp.lt.s32.totalorder %s29, 0
    %s31 = scalar_select %p30, %s29, 0
    %s32 = smul.u32 13, %s31
    %p33 = scmp.eq.s32.totalorder 0, 0
    // Predicated region
    $region10: #{tpu_custom_call.1} parent=1 // pred_check
      %p34 = pneg %p33
    $region11: #{tpu_custom_call.1} parent=1 // pred_check_branch
      %36 = sbr.rel (%p34) target = $region13
    $region12: #{tpu_custom_call.1} parent=1 // pred_region
      %vm37 = vcmask 123904
      %38 = vst.msk [vmem:[#allocation5] sm:$0x3] %vm37, 0.0
    $region13: #{tpu_custom_call.1} parent=1 // pred_fallthru
      _
    %v39 = vld [vmem:[#allocation2] sm:$0xff]
    %v40 = vld [vmem:[#allocation2 + $0x8] sm:$0xff]
    %v41 = vld [vmem:[#allocation2 + $0x10] sm:$0xff]
    %v42 = vld [vmem:[#allocation2 + $0x18] sm:$0xff]
    %v43 = vld [vmem:[#allocation2 + $0x20] sm:$0xff]
    %v44 = vld [vmem:[#allocation2 + $0x28] sm:$0xff]
    %v45 = vld [vmem:[#allocation2 + $0x30] sm:$0xff]
    %v46 = vld [vmem:[#allocation2 + $0x38] sm:$0xff]
    %v47 = vld [vmem:[#allocation2 + $0x40] sm:$0xff]
    %v48 = vld [vmem:[#allocation2 + $0x48] sm:$0xff]
    %v49 = vld [vmem:[#allocation2 + $0x50] sm:$0xff]
    %v50 = vld [vmem:[#allocation2 + $0x58] sm:$0xff]
    %v51 = vld [vmem:[#allocation2 + $0x60] sm:$0xff]
    %v52 = vld [vmem:[#allocation2 + $0x68] sm:$0xff]
    %v53 = vld [vmem:[#allocation2 + $0x70] sm:$0xff]
    %v54 = vld [vmem:[#allocation2 + $0x78] sm:$0xff]
    %v55 = vld [vmem:[#allocation2 + $0x80] sm:$0xff]
    %v56 = vld [vmem:[#allocation2 + $0x88] sm:$0xff]
    %v57 = vld [vmem:[#allocation2 + $0x90] sm:$0xff]
    %v58 = vld [vmem:[#allocation2 + $0x98] sm:$0xff]
    %v59 = vld [vmem:[#allocation2 + $0xa0] sm:$0xff]
    %v60 = vld [vmem:[#allocation2 + $0xa8] sm:$0xff]
    %v61 = vld [vmem:[#allocation2 + $0xb0] sm:$0xff]
    %v62 = vld [vmem:[#allocation2 + $0xb8] sm:$0xff]
    %v63 = vld [vmem:[#allocation2 + $0xc0] sm:$0xff]
    %v64 = vld [vmem:[#allocation2 + $0xc8] sm:$0xff]
    %v65 = vld [vmem:[#allocation2 + $0xd0] sm:$0xff]
    %v66 = vld [vmem:[#allocation2 + $0xd8] sm:$0xff]
    %v67 = vld [vmem:[#allocation2 + $0xe0] sm:$0xff]
    %v68 = vld [vmem:[#allocation2 + $0xe8] sm:$0xff]
    %v69 = vld [vmem:[#allocation2 + $0xf0] sm:$0xff]
    %v70 = vld [vmem:[#allocation2 + $0xf8] sm:$0xff]
    %v71 = vld [vmem:[#allocation2 + $0x100] sm:$0xff]
    %v72 = vld [vmem:[#allocation2 + $0x108] sm:$0xff]
    %v73 = vld [vmem:[#allocation2 + $0x110] sm:$0xff]
    %v74 = vld [vmem:[#allocation2 + $0x118] sm:$0xff]
    %v75 = vld [vmem:[#allocation2 + $0x120] sm:$0xff]
    %v76 = vld [vmem:[#allocation2 + $0x128] sm:$0xff]
    %v77 = vld [vmem:[#allocation2 + $0x130] sm:$0xff]
    %v78 = vld [vmem:[#allocation2 + $0x138] sm:$0xff]
    %v79 = vld [vmem:[#allocation2 + $0x140] sm:$0xff]
    %v80 = vld [vmem:[#allocation2 + $0x148] sm:$0xff]
    %v81 = vld [vmem:[#allocation2 + $0x150] sm:$0xff]
    %v82 = vld [vmem:[#allocation2 + $0x158] sm:$0xff]
    %v83 = vld [vmem:[#allocation2 + $0x160] sm:$0xff]
    %v84 = vld [vmem:[#allocation2 + $0x168] sm:$0xff]
    %v85 = vld [vmem:[#allocation2 + $0x170] sm:$0xff]
    %v86 = vld [vmem:[#allocation2 + $0x178] sm:$0xff]
    %v87 = vld [vmem:[#allocation2 + $0x180] sm:$0xff]
    %v88 = vld [vmem:[#allocation2 + $0x188] sm:$0xff]
    %v89 = vld [vmem:[#allocation2 + $0x190] sm:$0xff]
    %v90 = vld [vmem:[#allocation2 + $0x198] sm:$0xff]
    %s91 = sadd.s32 0, 0
    %s92 = smul.u32 %s91, 1664
    %v93 = vlaneseq
    %v94 = vand.u32 %v93, 127
    %v95 = vadd.s32 %v94, 128
    %v96 = vadd.s32 %v94, 256
    %v97 = vadd.s32 %v94, 384
    %v98 = vadd.s32 %v94, 512
    %v99 = vadd.s32 %v94, 640
    %v100 = vadd.s32 %v94, 768
    %v101 = vadd.s32 %v94, 896
    %v102 = vadd.s32 %v94, 1024
    %v103 = vadd.s32 %v94, 1152
    %v104 = vadd.s32 %v94, 1280
    %v105 = vadd.s32 %v94, 1408
    %v106 = vadd.s32 %v94, 1536
    %v107 = vstv %s92
    %v108 = vadd.s32 %v107, %v94
    %v109 = vadd.s32 %v107, %v95
    %v110 = vadd.s32 %v107, %v96
    %v111 = vadd.s32 %v107, %v97
    %v112 = vadd.s32 %v107, %v98
    %v113 = vadd.s32 %v107, %v99
    %v114 = vadd.s32 %v107, %v100
    %v115 = vadd.s32 %v107, %v101
    %v116 = vadd.s32 %v107, %v102
    %v117 = vadd.s32 %v107, %v103
    %v118 = vadd.s32 %v107, %v104
    %v119 = vadd.s32 %v107, %v105
    %v120 = vadd.s32 %v107, %v106
    %vm121 = vcmp.lt.s32.totalorder %v108, 1600
    %vm122 = vcmp.lt.s32.totalorder %v109, 1600
    %vm123 = vcmp.lt.s32.totalorder %v110, 1600
    %vm124 = vcmp.lt.s32.totalorder %v111, 1600
    %vm125 = vcmp.lt.s32.totalorder %v112, 1600
    %vm126 = vcmp.lt.s32.totalorder %v113, 1600
    %vm127 = vcmp.lt.s32.totalorder %v114, 1600
    %vm128 = vcmp.lt.s32.totalorder %v115, 1600
    %vm129 = vcmp.lt.s32.totalorder %v116, 1600
    %vm130 = vcmp.lt.s32.totalorder %v117, 1600
    %vm131 = vcmp.lt.s32.totalorder %v118, 1600
    %vm132 = vcmp.lt.s32.totalorder %v119, 1600
    %vm133 = vcmp.lt.s32.totalorder %v120, 1600
    %v134 = vsel %vm121, %v39, 0.0
    %v135 = vsel %vm122, %v40, 0.0
    %v136 = vsel %vm123, %v41, 0.0
    %v137 = vsel %vm124, %v42, 0.0
    %v138 = vsel %vm125, %v43, 0.0
    %v139 = vsel %vm126, %v44, 0.0
    %v140 = vsel %vm127, %v45, 0.0
    %v141 = vsel %vm128, %v46, 0.0
    %v142 = vsel %vm129, %v47, 0.0
    %v143 = vsel %vm130, %v48, 0.0
    %v144 = vsel %vm131, %v49, 0.0
    %v145 = vsel %vm132, %v50, 0.0
    %v146 = vsel %vm133, %v51, 0.0
    %v147 = vsel %vm121, %v52, 0.0
    %v148 = vsel %vm122, %v53, 0.0
    %v149 = vsel %vm123, %v54, 0.0
    %v150 = vsel %vm124, %v55, 0.0
    %v151 = vsel %vm125, %v56, 0.0
    %v152 = vsel %vm126, %v57, 0.0
    %v153 = vsel %vm127, %v58, 0.0
    %v154 = vsel %vm128, %v59, 0.0
    %v155 = vsel %vm129, %v60, 0.0
    %v156 = vsel %vm130, %v61, 0.0
    %v157 = vsel %vm131, %v62, 0.0
    %v158 = vsel %vm132, %v63, 0.0
    %v159 = vsel %vm133, %v64, 0.0
    %v160 = vsel %vm121, %v65, 0.0
    %v161 = vsel %vm122, %v66, 0.0
    %v162 = vsel %vm123, %v67, 0.0
    %v163 = vsel %vm124, %v68, 0.0
    %v164 = vsel %vm125, %v69, 0.0
    %v165 = vsel %vm126, %v70, 0.0
    %v166 = vsel %vm127, %v71, 0.0
    %v167 = vsel %vm128, %v72, 0.0
    %v168 = vsel %vm129, %v73, 0.0
    %v169 = vsel %vm130, %v74, 0.0
    %v170 = vsel %vm131, %v75, 0.0
    %v171 = vsel %vm132, %v76, 0.0
    %v172 = vsel %vm133, %v77, 0.0
    %v173 = vsel %vm121, %v78, 0.0
    %v174 = vsel %vm122, %v79, 0.0
    %v175 = vsel %vm123, %v80, 0.0
    %v176 = vsel %vm124, %v81, 0.0
    %v177 = vsel %vm125, %v82, 0.0
    %v178 = vsel %vm126, %v83, 0.0
    %v179 = vsel %vm127, %v84, 0.0
    %v180 = vsel %vm128, %v85, 0.0
    %v181 = vsel %vm129, %v86, 0.0
    %v182 = vsel %vm130, %v87, 0.0
    %v183 = vsel %vm131, %v88, 0.0
    %v184 = vsel %vm132, %v89, 0.0
    %v185 = vsel %vm133, %v90, 0.0
    %v186 = vld [vmem:[#allocation5] sm:$0x3]
    %v187 = vadd.f32 %v134, %v135
    %v188 = vadd.f32 %v187, %v136
    %v189 = vadd.f32 %v188, %v137
    %v190 = vadd.f32 %v189, %v138
    %v191 = vadd.f32 %v190, %v139
    %v192 = vadd.f32 %v191, %v140
    %v193 = vadd.f32 %v192, %v141
    %v194 = vadd.f32 %v193, %v142
    %v195 = vadd.f32 %v194, %v143
    %v196 = vadd.f32 %v195, %v144
    %v197 = vadd.f32 %v196, %v145
    %v198 = vadd.f32 %v197, %v146
    %199 = vadd.xlane.f32.xlu0 %v198
    %v200 = vpop.xlane.xlu0 %199
    %v201 = vadd.f32 %v147, %v148
    %v202 = vadd.f32 %v201, %v149
    %v203 = vadd.f32 %v202, %v150
    %v204 = vadd.f32 %v203, %v151
    %v205 = vadd.f32 %v204, %v152
    %v206 = vadd.f32 %v205, %v153
    %v207 = vadd.f32 %v206, %v154
    %v208 = vadd.f32 %v207, %v155
    %v209 = vadd.f32 %v208, %v156
    %v210 = vadd.f32 %v209, %v157
    %v211 = vadd.f32 %v210, %v158
    %v212 = vadd.f32 %v211, %v159
    %213 = vadd.xlane.f32.xlu0 %v212
    %v214 = vpop.xlane.xlu0 %213
    %v215 = vadd.f32 %v160, %v161
    %v216 = vadd.f32 %v215, %v162
    %v217 = vadd.f32 %v216, %v163
    %v218 = vadd.f32 %v217, %v164
    %v219 = vadd.f32 %v218, %v165
    %v220 = vadd.f32 %v219, %v166
    %v221 = vadd.f32 %v220, %v167
    %v222 = vadd.f32 %v221, %v168
    %v223 = vadd.f32 %v222, %v169
    %v224 = vadd.f32 %v223, %v170
    %v225 = vadd.f32 %v224, %v171
    %v226 = vadd.f32 %v225, %v172
    %227 = vadd.xlane.f32.xlu0 %v226
    %v228 = vpop.xlane.xlu0 %227
    %v229 = vadd.f32 %v173, %v174
    %v230 = vadd.f32 %v229, %v175
    %v231 = vadd.f32 %v230, %v176
    %v232 = vadd.f32 %v231, %v177
    %v233 = vadd.f32 %v232, %v178
    %v234 = vadd.f32 %v233, %v179
    %v235 = vadd.f32 %v234, %v180
    %v236 = vadd.f32 %v235, %v181
    %v237 = vadd.f32 %v236, %v182
    %v238 = vadd.f32 %v237, %v183
    %v239 = vadd.f32 %v238, %v184
    %v240 = vadd.f32 %v239, %v185
    %241 = vadd.xlane.f32.xlu0 %v240
    %v242 = vpop.xlane.xlu0 %241
    %v247 = vlaneseq
    %v248 = vshrl.u32 %v247, 7
    %v249 = vsub.s32 %v94, %v248
    %v250 = vrot.slane %v200, %v249
    %v251 = vadd.s32 %v94, 4294967288
    %v252 = vlaneseq
    %v253 = vshrl.u32 %v252, 7
    %v254 = vsub.s32 %v251, %v253
    %v255 = vrot.slane %v214, %v254
    %vm256 = vcmask 130112
    %v257 = vsel %vm256, %v255, %v250
    %v258 = vlaneseq
    %v259 = vshrl.u32 %v258, 7
    %v260 = vsub.s32 %v94, %v259
    %v261 = vrot.slane %v228, %v260
    %v262 = vlaneseq
    %v263 = vshrl.u32 %v262, 7
    %v264 = vsub.s32 %v251, %v263
    %v265 = vrot.slane %v242, %v264
    %v266 = vsel %vm256, %v265, %v261
    %vm267 = vcmask 1041409
    %v268 = vsel %vm267, %v266, %v257
    %v270 = vadd.f32 %v186, %v268
    %vm271 = vcmask 123904
    %272 = vst.msk [vmem:[#allocation5] sm:$0x3] %vm271, %v270
    // Predicated region
    $region14: #{tpu_custom_call.1} parent=1 // pred_check
      _
    $region15: #{tpu_custom_call.1} parent=1 // pred_check_branch
      %274 = sbr.rel (0) target = $region17
    $region16: #{tpu_custom_call.1} parent=1 // pred_region
      %s276 = ssub.s32 32, 32
      %277 = vsyncadd [#allocation4], %s276
      %s279 = sshll.u32 [#allocation5], 4
      %s280 = int_to_ptr.vmem [resolvable:$true] %s279
      %282 = dma.vmem_to_hbm [thread:$0]  %s280, 32, %s1, [#allocation4]
    $region17: #{tpu_custom_call.1} parent=1 // pred_fallthru
      _
    // Predicated region
    $region18: #{tpu_custom_call.1} parent=1 // pred_check
      _
    $region19: #{tpu_custom_call.1} parent=1 // pred_check_branch
      %284 = sbr.rel (0) target = $region21
    $region20: #{tpu_custom_call.1} parent=1 // pred_region
      %285 = dma.done [#allocation4], 32
    $region21: #{tpu_custom_call.1} parent=1 // pred_fallthru
      _
    %286 = vsyncpa [#allocation3], 1
    %287 = vsyncpa [#allocation4], 1

</llo_original>
